<compile_context>
chip_gen: v5e
topology: v5e:2x2
jax: 0.10.0
libtpu: 0.0.40
codegen_flags: <defaults>
</compile_context>

<pallas_src>
import functools
import math

import jax
import jax.numpy as jnp
from jax.experimental import pallas as pl
from jax.experimental.pallas import tpu as pltpu


# ---------------------------------------------------------------------------
# Parameter setup (deterministic, mirrors nn.Module.__init__)
# ---------------------------------------------------------------------------
def make_positional_encoding_table(max_len: int, d_model: int,
                                   dtype=jnp.float32) -> jax.Array:
    """Builds the sinusoidal table, shape (max_len, 1, d_model)."""
    position = jnp.arange(max_len, dtype=jnp.float32)[:, None]          # (L, 1)
    div_term = jnp.exp(
        jnp.arange(0, d_model, 2, dtype=jnp.float32)
        * (-math.log(10000.0) / d_model))                               # (D/2,)
    ang = position * div_term                                           # (L, D/2)
    pe = jnp.zeros((max_len, d_model), dtype=jnp.float32)
    pe = pe.at[:, 0::2].set(jnp.sin(ang))
    pe = pe.at[:, 1::2].set(jnp.cos(ang))
    # torch: pe.unsqueeze(0).transpose(0, 1) -> (max_len, 1, d_model)
    return pe[:, None, :].astype(dtype)


# ---------------------------------------------------------------------------
# Kernels
# ---------------------------------------------------------------------------
def _pe_add_kernel(x_ref, pe_ref, o_ref):
    # Pure VPU add.  pe broadcasts over batch in the 3-D path and is
    # element-aligned in the 2-D slab path; it is already in x.dtype.
    o_ref[...] = x_ref[...] + pe_ref[...]


def _hash_u32(v):
    # One-multiply avalanche (trimmed splitmix-style): plenty for a dropout
    # threshold test, several VALU ops/vreg cheaper than the 2-round version.
    v = (v ^ (v >> 16)) * jnp.uint32(0x7FEB352D)
    return v ^ (v >> 15)


def _pe_add_dropout_kernel(seed_ref, x_ref, pe_ref, o_ref, *,
                           p: float, block_rows: int):
    # Training-mode inverted dropout (scale 1/(1-p)).  Counter-based hash on
    # (seed, global element index): pure jnp integer ops, mask is tile- and
    # platform-independent.
    y = x_ref[...] + pe_ref[...]

    shape = x_ref.shape
    inner = 1
    for s in shape[1:]:
        inner *= s

    # Per-block flat element index: row iota * inner + within-row linear index.
    idx = jax.lax.broadcasted_iota(jnp.int32, shape, 0).astype(jnp.uint32)
    idx = idx * jnp.uint32(inner)
    stride = 1
    for d in range(len(shape) - 1, 0, -1):
        part = jax.lax.broadcasted_iota(jnp.int32, shape, d).astype(jnp.uint32)
        if stride != 1:
            part = part * jnp.uint32(stride)
        idx = idx + part
        stride *= shape[d]

    # Scalar block offset + seed mixing (scalar ops, once per tile).
    row0 = pl.program_id(0).astype(jnp.uint32) * jnp.uint32(block_rows)
    offset = (row0 * jnp.uint32(inner)
              + seed_ref[0].astype(jnp.uint32) * jnp.uint32(0x9E3779B9))

    u = _hash_u32(idx + offset)
    thresh = jnp.uint32(min(int(round(p * (2.0 ** 32))), 2 ** 32 - 1))
    keep = u >= thresh
    scale = jnp.asarray(1.0 / (1.0 - p), dtype=y.dtype)
    o_ref[...] = jnp.where(keep, y * scale, jnp.zeros_like(y))


# ---------------------------------------------------------------------------
# Wrapper helpers
# ---------------------------------------------------------------------------
def _tpu_kind() -> str:
    try:
        return jax.devices()[0].device_kind.lower()
    except Exception:
        return ""


def _block_budget() -> tuple[int, int]:
    """(target block bytes, min grid steps) per TPU generation."""
    kind = _tpu_kind()
    if ("v5 lite" in kind) or ("v5e" in kind) or ("v5lite" in kind):
        # 16 MiB scoped-VMEM default, ~0.8 TB/s HBM: 2 MiB blocks are already
        # near roofline; 3 arrays x 2 buffers x 2 MiB = 12 MiB fits.
        return 2 * 1024 * 1024, 1
    if "v7" in kind:
        # 3.2 TB/s HBM -> bigger blocks amortize the ~0.35 us step overhead,
        # but keep >= 4 grid steps so the "parallel" axis feeds both TCs.
        return 4 * 1024 * 1024, 4
    # v6e and friends: 32 MiB scoped default; 3 x 2 x 4 MiB = 24 MiB fits.
    return 4 * 1024 * 1024, 1


def _rows_per_block(total_rows: int, row_bytes: int,
                    target_bytes: int, min_steps: int) -> int:
    ts = max(1, target_bytes // max(1, row_bytes))
    if min_steps > 1 and total_rows >= 8 * min_steps:
        ts = min(ts, pl.cdiv(total_rows, min_steps))
    ts = int(min(ts, total_rows))
    if ts >= 8:
        ts -= ts % 8  # sublane-friendly
    return max(1, ts)


# ---------------------------------------------------------------------------
# Forward
# ---------------------------------------------------------------------------
def positional_encoding(x: jax.Array, pe: jax.Array, *,
                        dropout_p: float = 0.1,
                        training: bool = False,
                        seed: int = 0,
                        donate_x: bool = False) -> jax.Array:
    """Forward pass of PositionalEncoding.

    x:  (seq_len, batch, d_model)
    pe: (max_len, 1, d_model), seq_len <= max_len
    donate_x: set True only when the caller donates x (adds x->out aliasing).
    """
    seq_len, batch, d_model = x.shape
    assert pe.shape[0] >= seq_len and pe.shape[1] == 1 and pe.shape[2] == d_model

    use_dropout = training and dropout_p > 0.0
    if use_dropout and dropout_p >= 1.0:
        return jnp.zeros_like(x)  # torch.nn.Dropout(p=1.0) zeroes everything

    # --- layout selection --------------------------------------------------
    dense3d = (d_model % 128 == 0) and (batch % 8 == 0)
    if dense3d:
        # (ts, batch, d_model) blocks are already lane/sublane dense; keep pe
        # as (ts, 1, d_model) so its HBM traffic stays 1/batch of x traffic.
        x_in = x
        pe_in = pe if pe.dtype == x.dtype else pe.astype(x.dtype)
        total_rows, inner = seq_len, batch * d_model
    else:
        # Small trailing dims: flatten to a lane-dense 2-D slab, folding k
        # sequence rows into the lane dim so the width is a multiple of 128
        # when seq_len allows, and pre-tile pe into the element-aligned slab.
        w0 = batch * d_model
        k_req = 128 // math.gcd(w0, 128)
        k = k_req if (k_req > 1 and seq_len % k_req == 0) else 1
        total_rows, inner = seq_len // k, w0 * k
        x_in = x.reshape(total_rows, inner)
        pe_seq = pe[:seq_len]
        if pe_seq.dtype != x.dtype:
            pe_seq = pe_seq.astype(x.dtype)
        pe_in = jnp.broadcast_to(
            pe_seq, (seq_len, batch, d_model)).reshape(total_rows, inner)

    target_bytes, min_steps = _block_budget()
    ts = _rows_per_block(total_rows, inner * x.dtype.itemsize,
                         target_bytes, min_steps)
    grid = (pl.cdiv(total_rows, ts),)

    tail = (0,) * (x_in.ndim - 1)
    x_block = (ts,) + x_in.shape[1:]
    pe_block = (ts,) + pe_in.shape[1:]

    cparams = pltpu.CompilerParams(dimension_semantics=("parallel",))
    out_shape = jax.ShapeDtypeStruct(x_in.shape, x.dtype)
    # NOTE: pipeline_mode=pl.Buffered(3) on x/out is a possible further tweak
    # if a profile shows exposed DMA at step boundaries (most likely on v7x).

    if not use_dropout:
        idx_map = lambda i: (i,) + tail
        out = pl.pallas_call(
            _pe_add_kernel,
            out_shape=out_shape,
            grid_spec=pltpu.PrefetchScalarGridSpec(
                num_scalar_prefetch=0,
                grid=grid,
                in_specs=[
                    pl.BlockSpec(x_block, idx_map),
                    pl.BlockSpec(pe_block, idx_map),
                ],
                out_specs=pl.BlockSpec(x_block, idx_map),
            ),
            compiler_params=cparams,
            input_output_aliases=({0: 0} if donate_x else {}),
        )(x_in, pe_in)
    else:
        assert x.size < 2 ** 32, "uint32 counter hash would wrap"
        seed_arr = jnp.asarray([seed], dtype=jnp.int32)
        idx_map = lambda i, s: (i,) + tail  # scalar-prefetch ref is positional
        kernel = functools.partial(_pe_add_dropout_kernel,
                                   p=float(dropout_p), block_rows=ts)
        out = pl.pallas_call(
            kernel,
            out_shape=out_shape,
            grid_spec=pltpu.PrefetchScalarGridSpec(
                num_scalar_prefetch=1,  # seed lands in SMEM
                grid=grid,
                in_specs=[
                    pl.BlockSpec(x_block, idx_map),
                    pl.BlockSpec(pe_block, idx_map),
                ],
                out_specs=pl.BlockSpec(x_block, idx_map),
            ),
            compiler_params=cparams,
            # input index 0 is the prefetched seed, so x is input 1.
            input_output_aliases=({1: 0} if donate_x else {}),
        )(seed_arr, x_in, pe_in)

    return out if dense3d else out.reshape(seq_len, batch, d_model)


# ---------------------------------------------------------------------------
# Test
# ---------------------------------------------------------------------------
if __name__ == "__main__":
    SEQ, BATCH, D_MODEL, MAX_LEN = 8, 2, 32, 64
    P_DROP = 0.1

    key = jax.random.PRNGKey(0)
    x = jax.random.normal(key, (SEQ, BATCH, D_MODEL), dtype=jnp.float32)
    pe = make_positional_encoding_table(MAX_LEN, D_MODEL)

    # Eval mode (dropout = identity): compare against a pure-JAX reference.
    ref = x + pe[:SEQ]
    out_eval = jax.block_until_ready(
        positional_encoding(x, pe, dropout_p=P_DROP, training=False))
    assert out_eval.shape == x.shape and out_eval.dtype == x.dtype
    assert jnp.allclose(out_eval, ref, atol=1e-6, rtol=1e-6), "eval mismatch"

    # Training mode (in-kernel dropout).  Every element must be either ~0
    # (dropped) or ~(x+pe)/(1-p) (kept), and most elements must be kept.
    P_TRAIN = 0.25
    out_train = jax.block_until_ready(
        positional_encoding(x, pe, dropout_p=P_TRAIN, training=True, seed=123))
    assert out_train.shape == x.shape and out_train.dtype == x.dtype
    scaled = ref / (1.0 - P_TRAIN)
    is_kept = jnp.isclose(out_train, scaled, atol=1e-5, rtol=1e-5)
    is_dropped = jnp.abs(out_train) <= 1e-6
    assert bool(jnp.all(is_kept | is_dropped)), "dropout scaling mismatch"
    frac_kept = float(jnp.mean(is_kept.astype(jnp.float32)))
    assert 0.5 < frac_kept < 1.0, f"implausible keep fraction {frac_kept}"

    print("KERNEL_OK")
</pallas_src>

<mosaic_0001>
module attributes {stable_mosaic.version = 11 : i64} {
  func.func @_pe_add_kernel(%arg0: i32, %arg1: memref<4x128xf32, #tpu.memory_space<vmem>>, %arg2: memref<4x128xf32, #tpu.memory_space<vmem>>, %arg3: memref<4x128xf32, #tpu.memory_space<vmem>>) attributes {dimension_semantics = [#tpu.dimension_semantics<parallel>], iteration_bounds = array<i64: 1>, scalar_prefetch = 0 : i64, scratch_operands = 0 : i64, tpu.core_type = #tpu.core_type<tc>, window_params = [{transform_indices = @transform_0, window_bounds = array<i64: 4, 128>}, {transform_indices = @transform_1, window_bounds = array<i64: 4, 128>}, {transform_indices = @transform_2, window_bounds = array<i64: 4, 128>}]} {
    %c0 = arith.constant 0 : index
    %c0_0 = arith.constant 0 : index
    %0 = vector.load %arg1[%c0, %c0_0] : memref<4x128xf32, #tpu.memory_space<vmem>>, vector<4x128xf32>
    %c0_1 = arith.constant 0 : index
    %c0_2 = arith.constant 0 : index
    %1 = vector.load %arg2[%c0_1, %c0_2] : memref<4x128xf32, #tpu.memory_space<vmem>>, vector<4x128xf32>
    %2 = arith.addf %0, %1 : vector<4x128xf32>
    %c0_3 = arith.constant 0 : index
    %c0_4 = arith.constant 0 : index
    %3 = vector.load %arg3[%c0_3, %c0_4] : memref<4x128xf32, #tpu.memory_space<vmem>>, vector<4x128xf32>
    tpu.vector_store %arg3[%c0_3, %c0_4], %2 {strides = array<i32>} : memref<4x128xf32, #tpu.memory_space<vmem>>, vector<4x128xf32>,
    return
  }
  func.func @transform_0(%arg0: i32) -> (i32, i32) {
    %c0_i32 = arith.constant 0 : i32
    %c0_i32_0 = arith.constant 0 : i32
    return %arg0, %c0_i32 : i32, i32
  }
  func.func @transform_1(%arg0: i32) -> (i32, i32) {
    %c0_i32 = arith.constant 0 : i32
    %c0_i32_0 = arith.constant 0 : i32
    return %arg0, %c0_i32 : i32, i32
  }
  func.func @transform_2(%arg0: i32) -> (i32, i32) {
    %c0_i32 = arith.constant 0 : i32
    %c0_i32_0 = arith.constant 0 : i32
    return %arg0, %c0_i32 : i32, i32
  }
}

</mosaic_0001>

<llo_original>
// kernel: tpu_custom_call.1
$region0: #{tpu_custom_call.1}
  #allocation0 [shape = 'u32[]', space=smem, size = 0x4, offset = 0x4, fixed_abs, tag = 'smem constant byte address 0x4 - core index']
  #allocation1 [shape = 'u32[72,128]{1,0:T(1,128)}', space=vmem, size = 0x9000, scoped, tag = 'internal scratch']
  %s0 = inlined_call_operand.hbm [shape: f32[4,128], index: 0, kind: input, shape index: {}]
  %s1 = inlined_call_operand.hbm [shape: f32[4,128], index: 1, kind: input, shape index: {}]
  %s2 = inlined_call_operand.hbm [shape: f32[4,128], index: 2, kind: output, shape index: {}]
  %s3 = sld [smem:[#allocation0]]
  $region26: #{tpu_custom_call.1} parent=0
    _
  %s5 = ssub.s32 1, %s3
  %s6 = scalar_select 0, %s5, %s3
  $region1: #{tpu_custom_call.1} parent=0
    #allocation2 [shape = 'u8[2048]{0}', space=vmem, size = 0x800, scoped, tag = 'input window, operand 0, single buffered']
    #allocation3 [shape = 's32[1]{0}', space=sflag, size = 0x4, scoped, tag = 'scoped memory for tpu_custom_call.1']
    #allocation4 [shape = 's32[1]{0}', space=sflag, size = 0x4, scoped, tag = 'scoped memory for tpu_custom_call.1']
    #allocation5 [shape = 'u8[2048]{0}', space=vmem, size = 0x800, scoped, tag = 'input window, operand 1, single buffered']
    #allocation6 [shape = 's32[1]{0}', space=sflag, size = 0x4, scoped, tag = 'scoped memory for tpu_custom_call.1']
    #allocation7 [shape = 'u8[2048]{0}', space=vmem, size = 0x800, scoped, tag = 'output window, operand 0, single buffered']
    %7 = vsyncpa [#allocation3], 0
    %8 = vsyncpa [#allocation6], 0
    %9 = vsyncpa [#allocation4], 0
    // Predicated region
    $region2: #{tpu_custom_call.1} parent=1 // pred_check
      _
    $region3: #{tpu_custom_call.1} parent=1 // pred_check_branch
      %11 = sbr.rel (0) target = $region5
    $region4: #{tpu_custom_call.1} parent=1 // pred_region
      %13 = vsyncadd [#allocation3], 0
      %s15 = sshll.u32 %s0, 4
      %s16 = int_to_ptr.hbm [resolvable:$true] %s15
      %s17 = sshll.u32 [#allocation2], 4
      %s18 = int_to_ptr.vmem [resolvable:$true] %s17
      %20 = dma.hbm_to_vmem [thread:$0]  %s16, 64, %s18, [#allocation3]
    $region5: #{tpu_custom_call.1} parent=1 // pred_fallthru
      _
    // Predicated region
    $region6: #{tpu_custom_call.1} parent=1 // pred_check
      _
    $region7: #{tpu_custom_call.1} parent=1 // pred_check_branch
      %22 = sbr.rel (0) target = $region9
    $region8: #{tpu_custom_call.1} parent=1 // pred_region
      %24 = vsyncadd [#allocation6], 0
      %s26 = sshll.u32 %s1, 4
      %s27 = int_to_ptr.hbm [resolvable:$true] %s26
      %s28 = sshll.u32 [#allocation5], 4
      %s29 = int_to_ptr.vmem [resolvable:$true] %s28
      %31 = dma.hbm_to_vmem [thread:$0]  %s27, 64, %s29, [#allocation6]
    $region9: #{tpu_custom_call.1} parent=1 // pred_fallthru
      _
    // Predicated region
    $region10: #{tpu_custom_call.1} parent=1 // pred_check
      _
    $region11: #{tpu_custom_call.1} parent=1 // pred_check_branch
      %33 = sbr.rel (0) target = $region13
    $region12: #{tpu_custom_call.1} parent=1 // pred_region
      %35 = dma.done [#allocation3], 64
    $region13: #{tpu_custom_call.1} parent=1 // pred_fallthru
      _
    // Predicated region
    $region14: #{tpu_custom_call.1} parent=1 // pred_check
      _
    $region15: #{tpu_custom_call.1} parent=1 // pred_check_branch
      %37 = sbr.rel (0) target = $region17
    $region16: #{tpu_custom_call.1} parent=1 // pred_region
      %39 = dma.done [#allocation6], 64
    $region17: #{tpu_custom_call.1} parent=1 // pred_fallthru
      _
    %v40 = vld [vmem:[#allocation2] sm:$0xf]
    %v41 = vld [vmem:[#allocation5] sm:$0xf]
    %v42 = vadd.f32 %v40, %v41
    %43 = vst [vmem:[#allocation7] sm:$0xf] %v42
    // Predicated region
    $region18: #{tpu_custom_call.1} parent=1 // pred_check
      _
    $region19: #{tpu_custom_call.1} parent=1 // pred_check_branch
      %45 = sbr.rel (0) target = $region21
    $region20: #{tpu_custom_call.1} parent=1 // pred_region
      %47 = vsyncadd [#allocation4], 0
      %s49 = sshll.u32 [#allocation7], 4
      %s50 = int_to_ptr.vmem [resolvable:$true] %s49
      %s51 = sshll.u32 %s2, 4
      %s52 = int_to_ptr.hbm [resolvable:$true] %s51
      %54 = dma.vmem_to_hbm [thread:$0]  %s50, 64, %s52, [#allocation4]
    $region21: #{tpu_custom_call.1} parent=1 // pred_fallthru
      _
    // Predicated region
    $region22: #{tpu_custom_call.1} parent=1 // pred_check
      _
    $region23: #{tpu_custom_call.1} parent=1 // pred_check_branch
      %56 = sbr.rel (0) target = $region25
    $region24: #{tpu_custom_call.1} parent=1 // pred_region
      %58 = dma.done [#allocation4], 64
    $region25: #{tpu_custom_call.1} parent=1 // pred_fallthru
      _
    %59 = vsyncpa [#allocation3], 1
    %60 = vsyncpa [#allocation6], 1
    %61 = vsyncpa [#allocation4], 1

</llo_original>
